<compile_context>
chip_gen: v7x
topology: tpu7x:2x2x1
jax: 0.10.0
libtpu: 0.0.40
codegen_flags: <defaults>
</compile_context>

<pallas_src>
import functools

import jax
import jax.numpy as jnp
from jax.experimental import pallas as pl
from jax.experimental.pallas import tpu as pltpu


_NEG_LARGE = float(jnp.finfo(jnp.float32).min)   # finite "-inf" (avoids inf-inf NaN)


def _nll_smooth_kernel(x_ref, tgt_ref, out_ref, m_sc, se_sc, ws_sc, *,
                       confidence, smoothing, n_rows, n_cols):
    """Online fused NLL + label-smoothing over (batch, class) tiles.

    Grid = (batch_tiles [parallel], class_tiles [arbitrary, last]).
    Per row we carry across class tiles:
      m  : running max of logits (stable logsumexp)
      se : running sum(exp(x - m))
      ws : running sum(w * x), w = confidence*onehot(target) + smoothing/C
    At the last class tile:
      loss_row = (m + log(se)) - ws   ==  lse - conf*x_t - (smooth/C)*sum(x)
    (sum(w) == 1, so ws needs no max-rescaling.)
    """
    i = pl.program_id(0)
    k = pl.program_id(1)
    nk = pl.num_programs(1)

    x = x_ref[...].astype(jnp.float32)                          # (TB, TC)
    TB, TC = x.shape

    # Absolute class indices for this C tile.
    class_ids = jax.lax.broadcasted_iota(jnp.int32, (TB, TC), 1) + k * TC

    # Fused gather + smoothing weights -> single weighted reduction pass.
    w = jnp.where(class_ids == tgt_ref[...],
                  confidence + smoothing / n_cols,
                  smoothing / n_cols)

    if n_cols % TC != 0:
        # Ragged last class tile: mask padded columns with SELECTS so garbage
        # in the out-of-bounds region never propagates.
        valid = class_ids < n_cols
        x_lse = jnp.where(valid, x, _NEG_LARGE)
        wx = jnp.where(valid, w * x, 0.0)
    else:
        x_lse = x
        wx = w * x

    @pl.when(k == 0)
    def _():
        m_sc[...] = jnp.full(m_sc.shape, _NEG_LARGE, dtype=m_sc.dtype)
        se_sc[...] = jnp.zeros(se_sc.shape, dtype=se_sc.dtype)
        ws_sc[...] = jnp.zeros(ws_sc.shape, dtype=ws_sc.dtype)

    m_prev = m_sc[...]
    m_new = jnp.maximum(m_prev, jnp.max(x_lse, axis=-1, keepdims=True))
    se_sc[...] = se_sc[...] * jnp.exp(m_prev - m_new) + \
                 jnp.sum(jnp.exp(x_lse - m_new), axis=-1, keepdims=True)
    ws_sc[...] = ws_sc[...] + jnp.sum(wx, axis=-1, keepdims=True)
    m_sc[...] = m_new

    @pl.when(k == nk - 1)
    def _():
        loss_row = m_sc[...] + jnp.log(se_sc[...]) - ws_sc[...]   # (TB, 1)
        # Mask padded rows of the last batch tile (select, so NaNs don't leak).
        row_ids = jax.lax.broadcasted_iota(jnp.int32, (TB, 1), 0) + i * TB
        loss_row = jnp.where(row_ids < n_rows, loss_row, 0.0)
        out_ref[0, 0] = jnp.sum(loss_row)                          # per-tile partial


def _vmem_limit_bytes():
    """Generation-aware scoped-VMEM limit: ~3/4 of physical VMEM
    (v5e/v6e: 128 MiB -> 96 MiB; v7x: 64 MiB per TC -> 48 MiB)."""
    cap = None
    try:
        cap = getattr(pltpu.get_tpu_info(), "vmem_capacity_bytes", None)
    except Exception:
        cap = None
    if not cap:
        cap = 64 * 1024 * 1024            # conservative fallback == v7x per-TC VMEM
    return int(min(cap * 3 // 4, 96 * 1024 * 1024))


def _pick_tiles(B, C, itemsize, vmem_limit):
    """Tile sizes governed by the real VMEM footprint:
       2 x (double-buffered input tile, native dtype) + ~5 x (TB,TC) f32 temps,
    kept to ~60% of the scoped limit to leave the compiler headroom."""
    budget = int(vmem_limit * 0.6)
    per_elem = 2 * itemsize + 5 * 4
    max_elems = max(8 * 128, budget // per_elem)

    if 8 * C <= max_elems:
        tc = C                                         # full class dim in one tile
        tb = max_elems // C
        if tb >= B:
            tb = B                                     # full batch dim (always legal)
        else:
            tb = max(8, (tb // 8) * 8)                 # sublane-aligned
    else:
        # Huge class count (LM vocab): tile C lane-densely; the online logsumexp
        # in the kernel keeps the math exact across C tiles.
        tb = B if B < 8 else 8
        tc = max(128, ((max_elems // tb) // 128) * 128)
        tc = min(tc, C)
    return tb, tc


def nll_smooth(x, target, smoothing=0.1, block_rows=None, block_cols=None):
    """NLL loss with label smoothing. x: (B, C) logits, target: (B,) int labels."""
    B, C = x.shape
    confidence = 1.0 - smoothing
    tgt2d = target.astype(jnp.int32).reshape(B, 1)

    vmem_limit = _vmem_limit_bytes()
    itemsize = jnp.dtype(x.dtype).itemsize
    tb, tc = _pick_tiles(B, C, itemsize, vmem_limit)
    if block_rows is not None:
        tb = block_rows
    if block_cols is not None:
        tc = block_cols
    grid_b = pl.cdiv(B, tb)
    grid_c = pl.cdiv(C, tc)

    kernel = functools.partial(
        _nll_smooth_kernel,
        confidence=float(confidence),
        smoothing=float(smoothing),
        n_rows=B,
        n_cols=C,
    )

    partials = pl.pallas_call(
        kernel,
        out_shape=jax.ShapeDtypeStruct((grid_b, 1), jnp.float32),
        grid_spec=pltpu.PrefetchScalarGridSpec(
            num_scalar_prefetch=0,
            grid=(grid_b, grid_c),
            in_specs=[
                pl.BlockSpec((tb, tc), lambda i, k: (i, k)),   # logits tile
                pl.BlockSpec((tb, 1), lambda i, k: (i, 0)),    # targets tile
            ],
            out_specs=pl.BlockSpec(
                (1, 1), lambda i, k: (i, 0),
                memory_space=pltpu.MemorySpace.SMEM,           # one scalar per batch tile
            ),
            scratch_shapes=[
                pltpu.VMEM((tb, 1), jnp.float32),   # running max
                pltpu.VMEM((tb, 1), jnp.float32),   # running sum(exp)
                pltpu.VMEM((tb, 1), jnp.float32),   # running weighted sum
            ],
        ),
        compiler_params=pltpu.CompilerParams(
            dimension_semantics=("parallel", "arbitrary"),     # batch across TCs (v7x)
            vmem_limit_bytes=vmem_limit,
        ),
    )(x, tgt2d)

    return jnp.sum(partials) / jnp.float32(B)


def _reference(x, target, smoothing=0.1):
    confidence = 1.0 - smoothing
    logprobs = jax.nn.log_softmax(x.astype(jnp.float32), axis=-1)
    nll = -jnp.take_along_axis(logprobs, target[:, None].astype(jnp.int32), axis=-1)[:, 0]
    smooth = -jnp.mean(logprobs, axis=-1)
    return jnp.mean(confidence * nll + smoothing * smooth)


if __name__ == "__main__":
    # Case 1: toy shape from the module spec (single tile).
    key = jax.random.PRNGKey(0)
    kx, kt = jax.random.split(key)
    B, C = 8, 32
    x = jax.random.normal(kx, (B, C), dtype=jnp.float32)
    target = jax.random.randint(kt, (B,), 0, C, dtype=jnp.int32)

    loss = nll_smooth(x, target, smoothing=0.1)
    jax.block_until_ready(loss)
    ref = _reference(x, target, smoothing=0.1)
    assert jnp.allclose(loss, ref, atol=1e-5, rtol=1e-5), (loss, ref)

    # Case 2: batch grid + remainder-row masking (B % TB != 0).
    kx2, kt2 = jax.random.split(jax.random.PRNGKey(0), 2)
    B2, C2 = 20, 128
    x2 = jax.random.normal(kx2, (B2, C2), dtype=jnp.float32)
    t2 = jax.random.randint(kt2, (B2,), 0, C2, dtype=jnp.int32)

    loss2 = nll_smooth(x2, t2, smoothing=0.1, block_rows=8)
    jax.block_until_ready(loss2)
    ref2 = _reference(x2, t2, smoothing=0.1)
    assert jnp.allclose(loss2, ref2, atol=1e-5, rtol=1e-5), (loss2, ref2)

    # Case 3: class-axis tiling with online logsumexp + ragged last C tile
    # (C % TC != 0) + remainder rows, all at once.
    kx3, kt3 = jax.random.split(jax.random.PRNGKey(0), 2)
    B3, C3 = 20, 320
    x3 = jax.random.normal(kx3, (B3, C3), dtype=jnp.float32)
    t3 = jax.random.randint(kt3, (B3,), 0, C3, dtype=jnp.int32)

    loss3 = nll_smooth(x3, t3, smoothing=0.1, block_rows=8, block_cols=128)
    jax.block_until_ready(loss3)
    ref3 = _reference(x3, t3, smoothing=0.1)
    assert jnp.allclose(loss3, ref3, atol=1e-5, rtol=1e-5), (loss3, ref3)

    print("KERNEL_OK")
</pallas_src>

<mosaic_0001>
module attributes {stable_mosaic.version = 11 : i64} {
  func.func @_nll_smooth_kernel(%arg0: i32, %arg1: i32, %arg2: memref<8x32xf32, #tpu.memory_space<vmem>>, %arg3: memref<8x1xi32, #tpu.memory_space<vmem>>, %arg4: memref<1x1xf32, #tpu.memory_space<smem>>, %arg5: memref<8x1xf32, #tpu.memory_space<vmem>>, %arg6: memref<8x1xf32, #tpu.memory_space<vmem>>, %arg7: memref<8x1xf32, #tpu.memory_space<vmem>>) attributes {dimension_semantics = [#tpu.dimension_semantics<parallel>, #tpu.dimension_semantics<arbitrary>], iteration_bounds = array<i64: 1, 1>, scalar_prefetch = 0 : i64, scratch_operands = 3 : i64, tpu.core_type = #tpu.core_type<tc>, window_params = [{transform_indices = @transform_0, window_bounds = array<i64: 8, 32>}, {transform_indices = @transform_1, window_bounds = array<i64: 8, 1>}, {transform_indices = @transform_2, window_bounds = array<i64: 1, 1>}]} {
    %c0 = arith.constant 0 : index
    %c0_0 = arith.constant 0 : index
    %0 = vector.load %arg2[%c0, %c0_0] : memref<8x32xf32, #tpu.memory_space<vmem>>, vector<8x32xf32>
    %1 = tpu.iota {dimensions = array<i32: 1>} : vector<8x32xi32>
    %c32_i32 = arith.constant 32 : i32
    %2 = arith.muli %arg1, %c32_i32 : i32
    %3 = vector.broadcast %2 : i32 to vector<8x32xi32>
    %4 = arith.addi %1, %3 : vector<8x32xi32>
    %c0_1 = arith.constant 0 : index
    %c0_2 = arith.constant 0 : index
    %5 = vector.load %arg3[%c0_1, %c0_2] : memref<8x1xi32, #tpu.memory_space<vmem>>, vector<8x1xi32>
    %6 = vector.broadcast %5 : vector<8x1xi32> to vector<8x32xi32>
    %7 = arith.cmpi eq, %4, %6 : vector<8x32xi32>
    %cst = arith.constant 0.903124988 : f32
    %cst_3 = arith.constant 3.125000e-03 : f32
    %8 = vector.broadcast %cst : f32 to vector<8x32xf32>
    %9 = vector.broadcast %cst_3 : f32 to vector<8x32xf32>
    %10 = arith.select %7, %8, %9 : vector<8x32xi1>, vector<8x32xf32>
    %11 = arith.mulf %10, %0 : vector<8x32xf32>
    %c0_i32 = arith.constant 0 : i32
    %12 = arith.cmpi eq, %arg1, %c0_i32 : i32
    %13 = arith.extui %12 : i1 to i32
    %c0_i32_4 = arith.constant 0 : i32
    %14 = arith.cmpi ne, %13, %c0_i32_4 : i32
    scf.if %14 {
      %cst_22 = arith.constant -3.40282347E+38 : f32
      %39 = vector.broadcast %cst_22 : f32 to vector<8x1xf32>
      %c0_23 = arith.constant 0 : index
      %c0_24 = arith.constant 0 : index
      %40 = vector.load %arg5[%c0_23, %c0_24] : memref<8x1xf32, #tpu.memory_space<vmem>>, vector<8x1xf32>
      tpu.vector_store %arg5[%c0_23, %c0_24], %39 {strides = array<i32>} : memref<8x1xf32, #tpu.memory_space<vmem>>, vector<8x1xf32>,
      %cst_25 = arith.constant 0.000000e+00 : f32
      %41 = vector.broadcast %cst_25 : f32 to vector<8x1xf32>
      %c0_26 = arith.constant 0 : index
      %c0_27 = arith.constant 0 : index
      %42 = vector.load %arg6[%c0_26, %c0_27] : memref<8x1xf32, #tpu.memory_space<vmem>>, vector<8x1xf32>
      tpu.vector_store %arg6[%c0_26, %c0_27], %41 {strides = array<i32>} : memref<8x1xf32, #tpu.memory_space<vmem>>, vector<8x1xf32>,
      %cst_28 = arith.constant 0.000000e+00 : f32
      %43 = vector.broadcast %cst_28 : f32 to vector<8x1xf32>
      %c0_29 = arith.constant 0 : index
      %c0_30 = arith.constant 0 : index
      %44 = vector.load %arg7[%c0_29, %c0_30] : memref<8x1xf32, #tpu.memory_space<vmem>>, vector<8x1xf32>
      tpu.vector_store %arg7[%c0_29, %c0_30], %43 {strides = array<i32>} : memref<8x1xf32, #tpu.memory_space<vmem>>, vector<8x1xf32>,
    } else {
    }
    %c0_5 = arith.constant 0 : index
    %c0_6 = arith.constant 0 : index
    %15 = vector.load %arg5[%c0_5, %c0_6] : memref<8x1xf32, #tpu.memory_space<vmem>>, vector<8x1xf32>
    %cst_7 = arith.constant dense<0xFF800000> : vector<8xf32>
    %16 = vector.multi_reduction <maximumf>, %0, %cst_7 [1] : vector<8x32xf32> to vector<8xf32>
    %17 = vector.shape_cast %16 : vector<8xf32> to vector<8x1xf32>
    %18 = arith.maximumf %15, %17 : vector<8x1xf32>
    %c0_8 = arith.constant 0 : index
    %c0_9 = arith.constant 0 : index
    %19 = vector.load %arg6[%c0_8, %c0_9] : memref<8x1xf32, #tpu.memory_space<vmem>>, vector<8x1xf32>
    %20 = arith.subf %15, %18 : vector<8x1xf32>
    %21 = math.exp %20 : vector<8x1xf32>
    %22 = arith.mulf %19, %21 : vector<8x1xf32>
    %23 = vector.broadcast %18 : vector<8x1xf32> to vector<8x32xf32>
    %24 = arith.subf %0, %23 : vector<8x32xf32>
    %25 = math.exp %24 : vector<8x32xf32>
    %cst_10 = arith.constant dense<0.000000e+00> : vector<8xf32>
    %26 = vector.multi_reduction <add>, %25, %cst_10 [1] : vector<8x32xf32> to vector<8xf32>
    %27 = vector.shape_cast %26 : vector<8xf32> to vector<8x1xf32>
    %28 = arith.addf %22, %27 : vector<8x1xf32>
    %c0_11 = arith.constant 0 : index
    %c0_12 = arith.constant 0 : index
    %29 = vector.load %arg6[%c0_11, %c0_12] : memref<8x1xf32, #tpu.memory_space<vmem>>, vector<8x1xf32>
    tpu.vector_store %arg6[%c0_11, %c0_12], %28 {strides = array<i32>} : memref<8x1xf32, #tpu.memory_space<vmem>>, vector<8x1xf32>,
    %c0_13 = arith.constant 0 : index
    %c0_14 = arith.constant 0 : index
    %30 = vector.load %arg7[%c0_13, %c0_14] : memref<8x1xf32, #tpu.memory_space<vmem>>, vector<8x1xf32>
    %cst_15 = arith.constant dense<0.000000e+00> : vector<8xf32>
    %31 = vector.multi_reduction <add>, %11, %cst_15 [1] : vector<8x32xf32> to vector<8xf32>
    %32 = vector.shape_cast %31 : vector<8xf32> to vector<8x1xf32>
    %33 = arith.addf %30, %32 : vector<8x1xf32>
    %c0_16 = arith.constant 0 : index
    %c0_17 = arith.constant 0 : index
    %34 = vector.load %arg7[%c0_16, %c0_17] : memref<8x1xf32, #tpu.memory_space<vmem>>, vector<8x1xf32>
    tpu.vector_store %arg7[%c0_16, %c0_17], %33 {strides = array<i32>} : memref<8x1xf32, #tpu.memory_space<vmem>>, vector<8x1xf32>,
    %c0_18 = arith.constant 0 : index
    %c0_19 = arith.constant 0 : index
    %35 = vector.load %arg5[%c0_18, %c0_19] : memref<8x1xf32, #tpu.memory_space<vmem>>, vector<8x1xf32>
    tpu.vector_store %arg5[%c0_18, %c0_19], %18 {strides = array<i32>} : memref<8x1xf32, #tpu.memory_space<vmem>>, vector<8x1xf32>,
    %c0_i32_20 = arith.constant 0 : i32
    %36 = arith.cmpi eq, %arg1, %c0_i32_20 : i32
    %37 = arith.extui %36 : i1 to i32
    %c0_i32_21 = arith.constant 0 : i32
    %38 = arith.cmpi ne, %37, %c0_i32_21 : i32
    scf.if %38 {
      %c0_22 = arith.constant 0 : index
      %c0_23 = arith.constant 0 : index
      %39 = vector.load %arg5[%c0_22, %c0_23] : memref<8x1xf32, #tpu.memory_space<vmem>>, vector<8x1xf32>
      %c0_24 = arith.constant 0 : index
      %c0_25 = arith.constant 0 : index
      %40 = vector.load %arg6[%c0_24, %c0_25] : memref<8x1xf32, #tpu.memory_space<vmem>>, vector<8x1xf32>
      %41 = math.log %40 : vector<8x1xf32>
      %42 = arith.addf %39, %41 : vector<8x1xf32>
      %c0_26 = arith.constant 0 : index
      %c0_27 = arith.constant 0 : index
      %43 = vector.load %arg7[%c0_26, %c0_27] : memref<8x1xf32, #tpu.memory_space<vmem>>, vector<8x1xf32>
      %44 = arith.subf %42, %43 : vector<8x1xf32>
      %45 = tpu.iota {dimensions = array<i32: 0>} : vector<8x1xi32>
      %c8_i32 = arith.constant 8 : i32
      %46 = arith.muli %arg0, %c8_i32 : i32
      %47 = vector.broadcast %46 : i32 to vector<8x1xi32>
      %48 = arith.addi %45, %47 : vector<8x1xi32>
      %c8_i32_28 = arith.constant 8 : i32
      %49 = vector.broadcast %c8_i32_28 : i32 to vector<8x1xi32>
      %50 = arith.cmpi slt, %48, %49 : vector<8x1xi32>
      %cst_29 = arith.constant 0.000000e+00 : f32
      %51 = vector.broadcast %cst_29 : f32 to vector<8x1xf32>
      %52 = arith.select %50, %44, %51 : vector<8x1xi1>, vector<8x1xf32>
      %53 = vector.shape_cast %52 : vector<8x1xf32> to vector<1x8x1xf32>
      %cst_30 = arith.constant dense<0.000000e+00> : vector<1xf32>
      %54 = vector.multi_reduction <add>, %53, %cst_30 [1, 2] : vector<1x8x1xf32> to vector<1xf32>
      %55 = vector.shape_cast %54 : vector<1xf32> to vector<1x1x1xf32>
      %56 = vector.extract %55[0, 0, 0] : f32 from vector<1x1x1xf32>
      %c0_31 = arith.constant 0 : index
      %c0_32 = arith.constant 0 : index
      %57 = memref.load %arg4[%c0_31, %c0_32] : memref<1x1xf32, #tpu.memory_space<smem>>
      memref.store %56, %arg4[%c0_31, %c0_32] : memref<1x1xf32, #tpu.memory_space<smem>>
    } else {
    }
    return
  }
  func.func @transform_0(%arg0: i32, %arg1: i32) -> (i32, i32) {
    %c0_i32 = arith.constant 0 : i32
    return %arg0, %arg1 : i32, i32
  }
  func.func @transform_1(%arg0: i32, %arg1: i32) -> (i32, i32) {
    %c0_i32 = arith.constant 0 : i32
    %c0_i32_0 = arith.constant 0 : i32
    return %arg0, %c0_i32 : i32, i32
  }
  func.func @transform_2(%arg0: i32, %arg1: i32) -> (i32, i32) {
    %c0_i32 = arith.constant 0 : i32
    %c0_i32_0 = arith.constant 0 : i32
    return %arg0, %c0_i32 : i32, i32
  }
}

</mosaic_0001>

<llo_original>
// kernel: tpu_custom_call.1
$region0: #{tpu_custom_call.1}
  #allocation0 [shape = 'u32[]', space=smem, size = 0x4, offset = 0x4, fixed_abs, tag = 'smem constant byte address 0x4 - core index']
  #allocation1 [shape = 'u32[144,128]{1,0:T(1,128)}', space=vmem, size = 0x12000, scoped, tag = 'internal scratch']
  #allocation2 [shape = 'f32[8,1]{1,0:T(8,128)}', space=vmem, size = 0x1000, scoped, tag = 'scratch operand']
  #allocation3 [shape = 'f32[8,1]{1,0:T(8,128)}', space=vmem, size = 0x1000, scoped, tag = 'scratch operand']
  #allocation4 [shape = 'f32[8,1]{1,0:T(8,128)}', space=vmem, size = 0x1000, scoped, tag = 'scratch operand']
  %s0 = inlined_call_operand.vmem [shape: f32[8,32], index: 0, kind: input, shape index: {}]
  %s1 = inlined_call_operand.vmem [shape: s32[8,1], index: 1, kind: input, shape index: {}]
  %s2 = inlined_call_operand.hbm [shape: f32[1,1], index: 2, kind: output, shape index: {}]
  %s3 = sld [smem:[#allocation0]]
  $region26: #{tpu_custom_call.1} parent=0
    _
  %s5 = ssub.s32 1, %s3
  %s6 = scalar_select 0, %s5, %s3
  $region1: #{tpu_custom_call.1} parent=0
    #allocation5 [shape = 'u8[512]{0}', space=smem, size = 0x200, scoped, tag = 'output window, operand 0, single buffered']
    #allocation6 [shape = 's32[1]{0}', space=sflag, size = 0x4, scoped, tag = 'scoped memory for tpu_custom_call.1']
    %7 = vsyncpa [#allocation6], 0
    // Predicated region
    $region2: #{tpu_custom_call.1} parent=1 // pred_check
      _
    $region3: #{tpu_custom_call.1} parent=1 // pred_check_branch
      %9 = sbr.rel (0) target = $region5
    $region4: #{tpu_custom_call.1} parent=1 // pred_region
      _
    $region5: #{tpu_custom_call.1} parent=1 // pred_fallthru
      _
    // Predicated region
    $region6: #{tpu_custom_call.1} parent=1 // pred_check
      _
    $region7: #{tpu_custom_call.1} parent=1 // pred_check_branch
      %11 = sbr.rel (0) target = $region9
    $region8: #{tpu_custom_call.1} parent=1 // pred_region
      _
    $region9: #{tpu_custom_call.1} parent=1 // pred_fallthru
      _
    %v12 = vld [vmem:[%s0] sm:$0xff]
    %v13 = vlaneseq
    %v14 = vand.u32 %v13, 127
    %s15 = smul.u32 0, 32
    %v16 = vstv %s15
    %v17 = vadd.s32 %v14, %v16
    %v18 = vld [vmem:[%s1] sm:$0xff]
    %19 = vset.pattern.permute.xlu0 0
    %20 = vperm.xlu0 %19, %v18
    %v21 = vpop.permute.xlu0 %20
    %vm22 = vcmp.eq.s32.totalorder %v17, %v21
    %v23 = vsel %vm22, 0.903125, 0.003125
    %v24 = vmul.f32 %v23, %v12
    %p25 = scmp.eq.s32.totalorder 0, 0
    // Predicated region
    $region10: #{tpu_custom_call.1} parent=1 // pred_check
      %p26 = pneg %p25
    $region11: #{tpu_custom_call.1} parent=1 // pred_check_branch
      %28 = sbr.rel (%p26) target = $region13
    $region12: #{tpu_custom_call.1} parent=1 // pred_region
      %vm29 = vcmask 7168
      %30 = vst.msk [vmem:[#allocation2] sm:$0xff] %vm29, -3.4028235e+38
      %31 = vst.msk [vmem:[#allocation3] sm:$0xff] %vm29, 0.0
      %32 = vst.msk [vmem:[#allocation4] sm:$0xff] %vm29, 0.0
    $region13: #{tpu_custom_call.1} parent=1 // pred_fallthru
      _
    %v33 = vld [vmem:[#allocation2] sm:$0xff]
    %vm34 = vcmask 261120
    %v35 = vsel %vm34, %v12, -inf
    %36 = vmax.xlane.f32.xlu0 %v35
    %v37 = vpop.xlane.xlu0 %36
    %v38 = vmax.f32 %v33, %v37
    %v39 = vld [vmem:[#allocation3] sm:$0xff]
    %v40 = vsub.f32 %v33, %v38
    %v41 = vmul.f32 %v40, 1.442695
    %v42 = vpow.pop %v41
    %v43 = vmul.f32 %v39, %v42
    %45 = vset.pattern.permute.xlu0 0
    %46 = vperm.xlu0 %45, %v38
    %v47 = vpop.permute.xlu0 %46
    %v49 = vsub.f32 %v12, %v47
    %v50 = vmul.f32 %v49, 1.442695
    %v51 = vpow.pop %v50
    %v52 = vsel %vm34, %v51, 0.0
    %53 = vadd.xlane.f32.xlu0 %v52
    %v54 = vpop.xlane.xlu0 %53
    %v55 = vadd.f32 %v43, %v54
    %vm56 = vcmask 7168
    %57 = vst.msk [vmem:[#allocation3] sm:$0xff] %vm56, %v55
    %v58 = vld [vmem:[#allocation4] sm:$0xff]
    %v59 = vsel %vm34, %v24, 0.0
    %60 = vadd.xlane.f32.xlu0 %v59
    %v61 = vpop.xlane.xlu0 %60
    %v62 = vadd.f32 %v58, %v61
    %63 = vst.msk [vmem:[#allocation4] sm:$0xff] %vm56, %v62
    %64 = vst.msk [vmem:[#allocation2] sm:$0xff] %vm56, %v38
    // Predicated region
    $region14: #{tpu_custom_call.1} parent=1 // pred_check
      %p65 = pneg %p25
    $region15: #{tpu_custom_call.1} parent=1 // pred_check_branch
      %67 = sbr.rel (%p65) target = $region17
    $region16: #{tpu_custom_call.1} parent=1 // pred_region
      %v68 = vld [vmem:[#allocation2] sm:$0xff]
      %v69 = vld [vmem:[#allocation3] sm:$0xff]
      %v70 = vlog2.pop %v69
      %v71 = vmul.f32 %v70, 0.6931472
      %v72 = vadd.f32 %v68, %v71
      %v73 = vld [vmem:[#allocation4] sm:$0xff]
      %v74 = vsub.f32 %v72, %v73
      %v75 = vlaneseq
      %v76 = vshrl.u32 %v75, 7
      %s77 = smul.u32 0, 8
      %v78 = vstv %s77
      %v79 = vadd.s32 %v76, %v78
      %vm80 = vcmp.lt.s32.totalorder %v79, 8
      %v81 = vsel %vm80, %v74, 0.0
      %v82 = vsel %vm56, %v81, 0.0
      %83 = vadd.xlane.f32.xlu0 %v82
      %v84 = vpop.xlane.xlu0 %83
      %v85 = vrot.slane %v84, 4
      %v86 = vadd.f32 %v84, %v85
      %v87 = vrot.slane %v86, 2
      %v88 = vadd.f32 %v86, %v87
      %v89 = vrot.slane %v88, 1
      %v90 = vadd.f32 %v88, %v89
      %s91 = vtos %v90
      %s92 = scalar_lea.smem [#allocation5], 0
      %93 = sst [smem:[%s92]] %s91
    $region17: #{tpu_custom_call.1} parent=1 // pred_fallthru
      _
    // Predicated region
    $region18: #{tpu_custom_call.1} parent=1 // pred_check
      _
    $region19: #{tpu_custom_call.1} parent=1 // pred_check_branch
      %95 = sbr.rel (0) target = $region21
    $region20: #{tpu_custom_call.1} parent=1 // pred_region
      %s97 = ssub.s32 16, 16
      %98 = vsyncadd [#allocation6], %s97
      %101 = dma.smem_to_hbm [#allocation5], 16, %s2, [#allocation6]
    $region21: #{tpu_custom_call.1} parent=1 // pred_fallthru
      _
    // Predicated region
    $region22: #{tpu_custom_call.1} parent=1 // pred_check
      _
    $region23: #{tpu_custom_call.1} parent=1 // pred_check_branch
      %103 = sbr.rel (0) target = $region25
    $region24: #{tpu_custom_call.1} parent=1 // pred_region
      %104 = dma.done [#allocation6], 16
    $region25: #{tpu_custom_call.1} parent=1 // pred_fallthru
      _
    %105 = sfence
    %106 = vsyncpa [#allocation6], 1

</llo_original>
